<compile_context>
chip_gen: v6e
topology: v6e:2x2x1
jax: 0.10.0
libtpu: 0.0.40
codegen_flags: <defaults>
</compile_context>

<pallas_src>
import jax
import jax.numpy as jnp
from jax.experimental import pallas as pl
from jax.experimental.pallas import tpu as pltpu

K = 8  # block size, fixed by the module (self.k = 8)


# ----------------------------------------------------------------------------
# Fast path (perf-review changes):
#   * coarse tiles: TH K-row strips x full width per grid step (~2 MiB input
#     tile), instead of one 8-row strip per step -> amortizes ~0.35us/step
#     grid overhead and keeps <=~8 MiB resident (fits v7x scoped VMEM too).
#   * lane-dense output block: last dim = nwb*64 (>=128), so the writeback is
#     dense 128-lane stores / one big dense DMA instead of nwb masked 8-lane
#     stores into a 16x-bloated (.., 8, 8) VMEM layout.
#   * one vectorized reshape->transpose->reshape per tile instead of nwb
#     serialized per-patch lane-slice copies (compact XLU shuffle, hidden
#     under the HBM DMA of this purely memory-bound op).
#   * the final (B, nhb*nwb, 8, 8) view is a free, metadata-only reshape in
#     the wrapper (identical row-major byte layout).
# ----------------------------------------------------------------------------
def _split_kernel_vectorized(x_ref, o_ref):
    # x_ref: (1, TH*K, W)      -- TH strips of K rows, full width (dense lanes)
    # o_ref: (1, TH, nwb*K*K)  -- lane-dense flattened patches of those strips
    th = o_ref.shape[1]
    w = x_ref.shape[2]
    nwb = w // K
    x = x_ref[0]                               # (TH*K, W)
    x = x.reshape(th, K, nwb, K)               # (t, r, wb, c)
    x = jnp.transpose(x, (0, 2, 1, 3))         # (t, wb, r, c)  -- XLU shuffle
    o_ref[0] = x.reshape(th, nwb * K * K)      # dense lane stores


def _choose_th(nhb: int, w: int) -> int:
    """How many K-row strips to process per grid step.

    Target ~2 MiB per input tile (review: 0.5-2 MiB). Input + output tiles are
    the same size and both double-buffered, so ~8 MiB stays resident -- inside
    the scoped-VMEM defaults on v5e/v6e and within v7x's 64 MiB VMEM.
    """
    max_th = max(1, (2 * 1024 * 1024) // (K * w * 4))
    if nhb <= max_th:
        return nhb  # whole image height in one step; batch axis still shards cores
    best = 0
    for th in range(8, max_th + 1, 8):  # multiples of 8 keep (8,128)-aligned blocks
        if nhb % th == 0:
            best = th
    return best if best else nhb


def _block_splitting_fast(image: jax.Array) -> jax.Array:
    B, H, W = image.shape
    nhb, nwb = H // K, W // K
    th = _choose_th(nhb, W)
    out_flat = pl.pallas_call(
        _split_kernel_vectorized,
        out_shape=jax.ShapeDtypeStruct((B, nhb, nwb * K * K), image.dtype),
        grid=(B, nhb // th),
        in_specs=[pl.BlockSpec((1, th * K, W), lambda b, i: (b, i, 0))],
        out_specs=pl.BlockSpec((1, th, nwb * K * K), lambda b, i: (b, i, 0)),
        compiler_params=pltpu.CompilerParams(
            dimension_semantics=("parallel", "parallel")),
        # Pure-bandwidth op: zero flops, 2x the image bytes of HBM traffic.
        cost_estimate=pl.CostEstimate(
            flops=0, transcendentals=0,
            bytes_accessed=2 * B * H * W * image.dtype.itemsize),
    )(image)
    # Free reshape: (B, nhb, nwb*64) and (B, nhb*nwb, 8, 8) share byte layout.
    return out_flat.reshape(B, nhb * nwb, K, K)


# ----------------------------------------------------------------------------
# Safe path: the previously validated per-patch kernel (kept only as a
# fallback in case the installed Mosaic cannot lower the vectorized
# reshape/transpose body -- guarantees the op stays correct and runnable).
# ----------------------------------------------------------------------------
def _split_kernel_per_patch(x_ref, o_ref):
    # x_ref: (1, K, W); o_ref: (1, W//K, K, K)
    nwb = o_ref.shape[1]
    for j in range(nwb):
        o_ref[0, j, :, :] = x_ref[0, :, j * K:(j + 1) * K]


def _block_splitting_safe(image: jax.Array) -> jax.Array:
    B, H, W = image.shape
    nhb, nwb = H // K, W // K
    return pl.pallas_call(
        _split_kernel_per_patch,
        out_shape=jax.ShapeDtypeStruct((B, nhb * nwb, K, K), image.dtype),
        grid=(B, nhb),
        in_specs=[pl.BlockSpec((1, K, W), lambda b, i: (b, i, 0))],
        out_specs=pl.BlockSpec((1, nwb, K, K), lambda b, i: (b, i, 0, 0)),
        compiler_params=pltpu.CompilerParams(
            dimension_semantics=("parallel", "parallel")),
    )(image)


_USE_FAST = None  # decided (and cached) on the first eager call


def block_splitting(image: jax.Array) -> jax.Array:
    """Pallas TPU implementation of the PyTorch `block_splitting` module.

    image: (B, H, W) float32 with H % 8 == 0 and W % 8 == 0
    returns: (B, (H//8)*(W//8), 8, 8)
    """
    global _USE_FAST
    B, H, W = image.shape
    assert H % K == 0 and W % K == 0, "H and W must be multiples of 8"
    if _USE_FAST is None:
        try:
            out = _block_splitting_fast(image)  # eager call compiles synchronously
            _USE_FAST = True
            return out
        except Exception:  # Mosaic lowering unavailable for the vectorized body
            _USE_FAST = False
    if _USE_FAST:
        return _block_splitting_fast(image)
    return _block_splitting_safe(image)


def _reference(image: jax.Array) -> jax.Array:
    # Pure-JAX reference mirroring the PyTorch view/permute/view exactly.
    B, H, W = image.shape
    x = image.reshape(B, H // K, K, W // K, K)
    x = jnp.transpose(x, (0, 1, 3, 2, 4))
    return x.reshape(B, -1, K, K)


if __name__ == "__main__":
    key = jax.random.PRNGKey(0)

    # Small shape from the module spec: batch=2, spatial=16x16 -> (2, 4, 8, 8).
    image = jax.random.normal(key, (2, 16, 16), dtype=jnp.float32)
    out = jax.block_until_ready(block_splitting(image))
    ref = _reference(image)
    assert out.shape == ref.shape == (2, 4, 8, 8), out.shape
    assert out.dtype == ref.dtype
    assert bool(jnp.allclose(out, ref)), "mismatch vs reference (16x16)"

    # A second (still small) shape that exercises the coarsened multi-strip tile.
    image2 = jax.random.normal(jax.random.PRNGKey(1), (2, 64, 128), dtype=jnp.float32)
    out2 = jax.block_until_ready(block_splitting(image2))
    ref2 = _reference(image2)
    assert out2.shape == ref2.shape == (2, 128, 8, 8), out2.shape
    assert bool(jnp.allclose(out2, ref2)), "mismatch vs reference (64x128)"

    print("KERNEL_OK")
</pallas_src>

<mosaic_0001>
module attributes {stable_mosaic.version = 11 : i64} {
  func.func @_split_kernel_vectorized(%arg0: i32, %arg1: i32, %arg2: memref<1x16x16xf32, #tpu.memory_space<vmem>>, %arg3: memref<1x2x128xf32, #tpu.memory_space<vmem>>) attributes {dimension_semantics = [#tpu.dimension_semantics<parallel>, #tpu.dimension_semantics<parallel>], iteration_bounds = array<i64: 2, 1>, scalar_prefetch = 0 : i64, scratch_operands = 0 : i64, tpu.core_type = #tpu.core_type<tc>, window_params = [{transform_indices = @transform_0, window_bounds = array<i64: 1, 16, 16>}, {transform_indices = @transform_1, window_bounds = array<i64: 1, 2, 128>}]} {
    %c0 = arith.constant 0 : index
    %c0_0 = arith.constant 0 : index
    %c0_1 = arith.constant 0 : index
    %0 = vector.load %arg2[%c0, %c0_0, %c0_1] : memref<1x16x16xf32, #tpu.memory_space<vmem>>, vector<1x16x16xf32>
    %1 = vector.shape_cast %0 : vector<1x16x16xf32> to vector<16x16xf32>
    %2 = vector.shape_cast %1 : vector<16x16xf32> to vector<2x8x2x8xf32>
    %3 = tpu.transpose %2, [0, 2, 1, 3] : vector<2x8x2x8xf32> -> vector<2x2x8x8xf32>
    %4 = vector.shape_cast %3 : vector<2x2x8x8xf32> to vector<2x128xf32>
    %c0_2 = arith.constant 0 : index
    %c0_3 = arith.constant 0 : index
    %c0_4 = arith.constant 0 : index
    %5 = vector.load %arg3[%c0_2, %c0_3, %c0_4] : memref<1x2x128xf32, #tpu.memory_space<vmem>>, vector<1x2x128xf32>
    %6 = vector.shape_cast %5 : vector<1x2x128xf32> to vector<2x128xf32>
    %7 = vector.shape_cast %4 : vector<2x128xf32> to vector<1x2x128xf32>
    tpu.vector_store %arg3[%c0_2, %c0_3, %c0_4], %7 {strides = array<i32>} : memref<1x2x128xf32, #tpu.memory_space<vmem>>, vector<1x2x128xf32>,
    return
  }
  func.func @transform_0(%arg0: i32, %arg1: i32) -> (i32, i32, i32) {
    %c0_i32 = arith.constant 0 : i32
    %c0_i32_0 = arith.constant 0 : i32
    return %arg0, %arg1, %c0_i32 : i32, i32, i32
  }
  func.func @transform_1(%arg0: i32, %arg1: i32) -> (i32, i32, i32) {
    %c0_i32 = arith.constant 0 : i32
    %c0_i32_0 = arith.constant 0 : i32
    return %arg0, %arg1, %c0_i32 : i32, i32, i32
  }
}

module attributes {stable_mosaic.version = 11 : i64} {
  func.func @_split_kernel_per_patch(%arg0: i32, %arg1: i32, %arg2: memref<1x8x16xf32, #tpu.memory_space<vmem>>, %arg3: memref<1x2x8x8xf32, #tpu.memory_space<vmem>>) attributes {dimension_semantics = [#tpu.dimension_semantics<parallel>, #tpu.dimension_semantics<parallel>], iteration_bounds = array<i64: 2, 2>, scalar_prefetch = 0 : i64, scratch_operands = 0 : i64, tpu.core_type = #tpu.core_type<tc>, window_params = [{transform_indices = @transform_0, window_bounds = array<i64: 1, 8, 16>}, {transform_indices = @transform_1, window_bounds = array<i64: 1, 2, 8, 8>}]} {
    %c0 = arith.constant 0 : index
    %c0_0 = arith.constant 0 : index
    %c0_1 = arith.constant 0 : index
    %0 = vector.load %arg2[%c0, %c0_0, %c0_1] : memref<1x8x16xf32, #tpu.memory_space<vmem>>, vector<1x8x8xf32>
    %1 = vector.shape_cast %0 : vector<1x8x8xf32> to vector<8x8xf32>
    %c0_2 = arith.constant 0 : index
    %c0_3 = arith.constant 0 : index
    %c0_4 = arith.constant 0 : index
    %c0_5 = arith.constant 0 : index
    %2 = vector.load %arg3[%c0_2, %c0_3, %c0_4, %c0_5] : memref<1x2x8x8xf32, #tpu.memory_space<vmem>>, vector<1x1x8x8xf32>
    %3 = vector.shape_cast %2 : vector<1x1x8x8xf32> to vector<8x8xf32>
    %4 = vector.shape_cast %1 : vector<8x8xf32> to vector<1x1x8x8xf32>
    tpu.vector_store %arg3[%c0_2, %c0_3, %c0_4, %c0_5], %4 {strides = array<i32>} : memref<1x2x8x8xf32, #tpu.memory_space<vmem>>, vector<1x1x8x8xf32>,
    %c0_6 = arith.constant 0 : index
    %c0_7 = arith.constant 0 : index
    %c8 = arith.constant 8 : index
    %5 = vector.load %arg2[%c0_6, %c0_7, %c8] : memref<1x8x16xf32, #tpu.memory_space<vmem>>, vector<1x8x8xf32>
    %6 = vector.shape_cast %5 : vector<1x8x8xf32> to vector<8x8xf32>
    %c0_8 = arith.constant 0 : index
    %c1 = arith.constant 1 : index
    %c0_9 = arith.constant 0 : index
    %c0_10 = arith.constant 0 : index
    %7 = vector.load %arg3[%c0_8, %c1, %c0_9, %c0_10] : memref<1x2x8x8xf32, #tpu.memory_space<vmem>>, vector<1x1x8x8xf32>
    %8 = vector.shape_cast %7 : vector<1x1x8x8xf32> to vector<8x8xf32>
    %9 = vector.shape_cast %6 : vector<8x8xf32> to vector<1x1x8x8xf32>
    tpu.vector_store %arg3[%c0_8, %c1, %c0_9, %c0_10], %9 {strides = array<i32>} : memref<1x2x8x8xf32, #tpu.memory_space<vmem>>, vector<1x1x8x8xf32>,
    return
  }
  func.func @transform_0(%arg0: i32, %arg1: i32) -> (i32, i32, i32) {
    %c0_i32 = arith.constant 0 : i32
    %c0_i32_0 = arith.constant 0 : i32
    return %arg0, %arg1, %c0_i32 : i32, i32, i32
  }
  func.func @transform_1(%arg0: i32, %arg1: i32) -> (i32, i32, i32, i32) {
    %c0_i32 = arith.constant 0 : i32
    %c0_i32_0 = arith.constant 0 : i32
    %c0_i32_1 = arith.constant 0 : i32
    return %arg0, %arg1, %c0_i32, %c0_i32_0 : i32, i32, i32, i32
  }
}

</mosaic_0001>

<llo_original>
// kernel: tpu_custom_call.1
$region0: #{tpu_custom_call.1}
  #allocation0 [shape = 'u32[]', space=smem, size = 0x4, offset = 0x4, fixed_abs, tag = 'smem constant byte address 0x4 - core index']
  #allocation1 [shape = 'u32[144,128]{1,0:T(1,128)}', space=vmem, size = 0x12000, scoped, tag = 'internal scratch']
  %s0 = inlined_call_operand.hbm [shape: f32[2,16,16], index: 0, kind: input, shape index: {}]
  %s1 = inlined_call_operand.hbm [shape: f32[2,4,8,8], index: 1, kind: output, shape index: {}]
  %s2 = sld [smem:[#allocation0]]
  $region41: #{tpu_custom_call.1} parent=0
    _
  %s4 = ssub.s32 1, %s2
  %s5 = scalar_select 0, %s4, %s2
  $region1: #{tpu_custom_call.1} parent=0
    #allocation2 [shape = 'u8[8192]{0}', space=vmem, size = 0x2000, scoped, tag = 'input window, operand 0']
    #allocation3 [shape = 's32[2]{0}', space=sflag, size = 0x8, scoped, tag = 'scoped memory for tpu_custom_call.1']
    #allocation4 [shape = 's32[2]{0}', space=sflag, size = 0x8, scoped, tag = 'scoped memory for tpu_custom_call.1']
    #allocation5 [shape = 'u8[16384]{0}', space=vmem, size = 0x4000, scoped, tag = 'output window, operand 0']
    %6 = vsyncpa [#allocation3], 0
    %s7 = scalar_lea.sflag [#allocation3], 1
    %8 = vsyncpa %s7, 0
    %9 = vsyncpa [#allocation4], 0
    %s10 = scalar_lea.sflag [#allocation4], 1
    %11 = vsyncpa %s10, 0
    loop: start=0, step=1, limit=6
    $region2: #{tpu_custom_call.1} parent=1 // loop_pre_header
      _
    $region3: #{tpu_custom_call.1} parent=1 // loop_header
      %s13 = sphi 0, %s17
      %p14 = scmp.ge.s32.totalorder %s13, 6
      %s20 = sphi 0, %s32
      %s21 = sphi 0, %s28
      %s22 = sphi 0, %s20
      %s23 = sphi 0, %s21
      %s24 = sphi 0, %s22
      %s25 = sphi 0, %s23
      %s37 = sphi 0, %s39
      %s40 = sphi 0, %s37
      %s41 = sphi 0, %s40
      %s57 = sphi 0, %s41
      %s65 = sphi 0, %s67
      %s68 = sphi 0, %s65
      %s69 = sphi 0, %s68
      %s85 = sphi 0, %s69
    $region4: #{tpu_custom_call.1} parent=1 // loop_header_branch
      %16 = sbr.rel (%p14) target = $region8
    $region5: #{tpu_custom_call.1} parent=1 // loop_body
      %s18 = ssub.s32 %s13, 1
      %s19 = ssub.s32 %s13, 2
      %s26 = sadd.s32 1, %s21
      %p27 = scmp.ge.s32.totalorder %s26, 2
      %s28 = scalar_select %p27, 0, %s26
      %s29 = sadd.s32 1, %s20
      %s30 = scalar_select %p27, %s29, %s20
      %p31 = scmp.ge.s32.totalorder %s30, 2
      %s32 = scalar_select %p31, 0, %s30
      %s33 = ssub.s32 %s20, %s32
      %s34 = ssub.s32 %s21, %s28
      %s35 = sor.u32 %s33, %s34
      %p36 = scmp.eq.s32.totalorder %s35, 0
      %s38 = sadd.s32 %s37, 1
      %s39 = scalar_select %p36, %s37, %s38
      %p42 = pneg %p36
      %p43 = scmp.eq.s32.totalorder %s13, 3
      %p44 = por %p42, %p43
      %p45 = scmp.ne.s32.totalorder %s37, %s40
      %p46 = scmp.eq.s32.totalorder %s13, 0
      %p47 = por %p45, %p46
      %p48 = scmp.ne.s32.totalorder %s37, %s40
      %p49 = scmp.eq.s32.totalorder %s18, 3
      %p50 = por %p48, %p49
      %p51 = scmp.ne.s32.totalorder %s40, %s41
      %p52 = scmp.eq.s32.totalorder %s18, 0
      %p53 = por %p51, %p52
      %p54 = scmp.ne.s32.totalorder %s40, %s41
      %p55 = scmp.eq.s32.totalorder %s19, 3
      %p56 = por %p54, %p55
      %p58 = scmp.ne.s32.totalorder %s41, %s57
      %p59 = scmp.eq.s32.totalorder %s19, 0
      %p60 = por %p58, %p59
      %s61 = ssub.s32 %s20, %s32
      %s62 = ssub.s32 %s21, %s28
      %s63 = sor.u32 %s61, %s62
      %p64 = scmp.eq.s32.totalorder %s63, 0
      %s66 = sadd.s32 %s65, 1
      %s67 = scalar_select %p64, %s65, %s66
      %p70 = pneg %p64
      %p71 = scmp.eq.s32.totalorder %s13, 3
      %p72 = por %p70, %p71
      %p73 = scmp.ne.s32.totalorder %s65, %s68
      %p74 = scmp.eq.s32.totalorder %s13, 0
      %p75 = por %p73, %p74
      %p76 = scmp.ne.s32.totalorder %s65, %s68
      %p77 = scmp.eq.s32.totalorder %s18, 3
      %p78 = por %p76, %p77
      %p79 = scmp.ne.s32.totalorder %s68, %s69
      %p80 = scmp.eq.s32.totalorder %s18, 0
      %p81 = por %p79, %p80
      %p82 = scmp.ne.s32.totalorder %s68, %s69
      %p83 = scmp.eq.s32.totalorder %s19, 3
      %p84 = por %p82, %p83
      %p86 = scmp.ne.s32.totalorder %s69, %s85
      %p87 = scmp.eq.s32.totalorder %s19, 0
      %p88 = por %p86, %p87
      %p89 = scmp.le.s32.totalorder 1, %s13
      %p90 = scmp.lt.s32.totalorder %s13, 5
      %p91 = pnand %p89, %p90
      %p92 = pneg %p91
      // Predicated region
      $region9: #{tpu_custom_call.1} parent=5 // pred_check
        _
      $region10: #{tpu_custom_call.1} parent=5 // pred_check_branch
        %94 = sbr.rel (%p91) target = $region12
      $region11: #{tpu_custom_call.1} parent=5 // pred_region
        %s95 = ssub.s32 %s13, 1
      $region12: #{tpu_custom_call.1} parent=5 // pred_fallthru
        _
      %p96 = scmp.lt.s32.totalorder %s13, 4
      // Predicated region
      $region13: #{tpu_custom_call.1} parent=5 // pred_check
        %p97 = pneg %p96
      $region14: #{tpu_custom_call.1} parent=5 // pred_check_branch
        %99 = sbr.rel (%p97) target = $region16
      $region15: #{tpu_custom_call.1} parent=5 // pred_region
        // Predicated region
        $region17: #{tpu_custom_call.1} parent=15 // pred_check
          %p100 = pneg %p47
        $region18: #{tpu_custom_call.1} parent=15 // pred_check_branch
          %102 = sbr.rel (%p100) target = $region20
        $region19: #{tpu_custom_call.1} parent=15 // pred_region
          %s103 = sand.u32 %s37, 1
          %s104 = scalar_lea.sflag [#allocation3], %s103
          %s105 = sand.u32 %s37, 1
          %s106 = smul.addr %s105, 8
          %s107 = scalar_lea.vmem [#allocation2], %s106
          %s109 = ssub.s32 128, 128
          %110 = vsyncadd %s104, %s109
          %s111 = smul.addr %s20, 2
          %s112 = sadd.s32 %s21, %s111
          %s113 = smul.addr %s112, 128
          %s114 = scalar_lea.hbm %s0, %s113
          %s116 = sshll.u32 %s107, 4
          %s117 = int_to_ptr.vmem [resolvable:$true] %s116
          %119 = dma.hbm_to_vmem [thread:$0]  %s114, 128, %s117, %s104
        $region20: #{tpu_custom_call.1} parent=15 // pred_fallthru
          _
      $region16: #{tpu_custom_call.1} parent=5 // pred_fallthru
        _
      %p120 = scmp.le.s32.totalorder 1, %s13
      %p121 = scmp.lt.s32.totalorder %s13, 5
      %p122 = pnand %p120, %p121
      %p123 = pneg %p122
      // Predicated region
      $region21: #{tpu_custom_call.1} parent=5 // pred_check
        _
      $region22: #{tpu_custom_call.1} parent=5 // pred_check_branch
        %125 = sbr.rel (%p122) target = $region24
      $region23: #{tpu_custom_call.1} parent=5 // pred_region
        %s126 = ssub.s32 %s13, 1
        %s127 = sand.u32 %s40, 1
        %s128 = scalar_lea.sflag [#allocation3], %s127
        %s129 = sand.u32 %s40, 1
        %s130 = smul.addr %s129, 8
        %s131 = scalar_lea.vmem [#allocation2], %s130
        // Predicated region
        $region25: #{tpu_custom_call.1} parent=23 // pred_check
          %p132 = pneg %p53
        $region26: #{tpu_custom_call.1} parent=23 // pred_check_branch
          %134 = sbr.rel (%p132) target = $region28
        $region27: #{tpu_custom_call.1} parent=23 // pred_region
          %135 = dma.done %s128, 128
        $region28: #{tpu_custom_call.1} parent=23 // pred_fallthru
          _
        %s136 = sand.u32 %s40, 1
        %s137 = scalar_lea.sflag [#allocation3], %s136
        %s138 = sand.u32 %s40, 1
        %s139 = smul.addr %s138, 8
        %s140 = scalar_lea.vmem [#allocation2], %s139
        %p141 = pneg %p53
        %p142 = pneg %p50
        %p143 = pneg %p81
        %p144 = pneg %p78
        %s145 = sand.u32 %s68, 1
        %s146 = scalar_lea.sflag [#allocation4], %s145
        %s147 = sand.u32 %s68, 1
        %s148 = smul.addr %s147, 16
        %s149 = scalar_lea.vmem [#allocation5], %s148
        %s150 = smul.u32 2, %s23
        %v151 = vld [vmem:[%s131] sm:$0xff]
        %vm152 = vcmask 64512
        %153 = vst.msk [vmem:[%s149] sm:$0xff] %vm152, %v151
        %v154 = vld [vmem:[%s131] sm:$0xff]
        %156 = vrot.lane.b32.xlu0 %v154, 120
        %v157 = vpop.permute.xlu0 %156
        %s159 = scalar_lea.vmem %s149, 8 [#allocation5]
        %160 = vst.msk [vmem:[%s159] sm:$0xff] %vm152, %v157
        %s161 = sand.u32 %s68, 1
        %s162 = scalar_lea.sflag [#allocation4], %s161
        %s163 = sand.u32 %s68, 1
        %s164 = smul.addr %s163, 16
        %s165 = scalar_lea.vmem [#allocation5], %s164
        // Predicated region
        $region29: #{tpu_custom_call.1} parent=23 // pred_check
          %p166 = pneg %p78
        $region30: #{tpu_custom_call.1} parent=23 // pred_check_branch
          %168 = sbr.rel (%p166) target = $region32
        $region31: #{tpu_custom_call.1} parent=23 // pred_region
          %s169 = smul.u32 2, %s23
          %s171 = ssub.s32 256, 256
          %172 = vsyncadd %s162, %s171
          %s173 = smul.addr %s22, 4
          %s174 = sadd.s32 %s169, %s173
          %s175 = smul.addr %s174, 128
          %s176 = scalar_lea.hbm %s1, %s175
          %s177 = sshll.u32 %s165, 4
          %s178 = int_to_ptr.vmem [resolvable:$true] %s177
          %183 = dma.vmem_to_hbm [thread:$0]  %s178, 256, %s176, %s162, 128, 128, 8
        $region32: #{tpu_custom_call.1} parent=23 // pred_fallthru
          _
      $region24: #{tpu_custom_call.1} parent=5 // pred_fallthru
        _
      %p184 = scmp.le.s32.totalorder 2, %s13
      // Predicated region
      $region33: #{tpu_custom_call.1} parent=5 // pred_check
        %p185 = pneg %p184
      $region34: #{tpu_custom_call.1} parent=5 // pred_check_branch
        %187 = sbr.rel (%p185) target = $region36
      $region35: #{tpu_custom_call.1} parent=5 // pred_region
        %s188 = ssub.s32 %s13, 2
        // Predicated region
        $region37: #{tpu_custom_call.1} parent=35 // pred_check
          %p189 = pneg %p84
        $region38: #{tpu_custom_call.1} parent=35 // pred_check_branch
          %191 = sbr.rel (%p189) target = $region40
        $region39: #{tpu_custom_call.1} parent=35 // pred_region
          %s192 = sand.u32 %s69, 1
          %s193 = scalar_lea.sflag [#allocation4], %s192
          %s194 = sand.u32 %s69, 1
          %s195 = smul.addr %s194, 16
          %s196 = scalar_lea.vmem [#allocation5], %s195
          %197 = dma.done %s193, 256
        $region40: #{tpu_custom_call.1} parent=35 // pred_fallthru
          _
      $region36: #{tpu_custom_call.1} parent=5 // pred_fallthru
        _
    $region6: #{tpu_custom_call.1} parent=1 // loop_footer
      %s17 = sadd.s32 1, %s13
    $region7: #{tpu_custom_call.1} parent=1 // loop_footer_branch
      %12 = sbr.rel target = $region3
    $region8: #{tpu_custom_call.1} parent=1 // loop_exit
      _
    %198 = vsyncpa [#allocation3], 1
    %s199 = scalar_lea.sflag [#allocation3], 1
    %200 = vsyncpa %s199, 1
    %201 = vsyncpa [#allocation4], 1
    %s202 = scalar_lea.sflag [#allocation4], 1
    %203 = vsyncpa %s202, 1

</llo_original>
